<compile_context>
chip_gen: v5e
topology: v5e:2x2
jax: 0.10.0
libtpu: 0.0.40
codegen_flags: <defaults>
</compile_context>

<pallas_src>
import jax
import jax.numpy as jnp
from jax.experimental import pallas as pl
from jax.experimental.pallas import tpu as pltpu


def _round_up(x, m):
    return ((x + m - 1) // m) * m


def _cdiv(a, b):
    return -(-a // b)


def _has_bf16_vpu():
    """True on TPU generations with bf16 VALU (v6e/Trillium, v7x).

    v5e and earlier have no bf16 elementwise units, so keep the f32 path
    there.  Detection failure falls back to the (always-correct) f32 path.
    """
    try:
        kind = jax.devices()[0].device_kind.lower()
    except Exception:
        return False
    if "tpu" not in kind:
        return False
    return not any(tag in kind for tag in ("v2", "v3", "v4", "v5"))


def _value_kernel(belief_ref, state_ref, w1b_ref, w1s_ref, b1_ref,
                  w2_ref, b2_ref, w3_ref, b3_ref, o_ref):
    mx = w2_ref.dtype   # MXU operand dtype (bf16), f32 accumulation
    ew = b1_ref.dtype   # elementwise dtype: bf16 on v6e/v7x, f32 on v5e

    # fc1 with the concat fused as two partial matmuls (f32 accumulation).
    h = jnp.dot(belief_ref[...].astype(mx), w1b_ref[...],
                preferred_element_type=jnp.float32)
    h = h + jnp.dot(state_ref[...].astype(mx), w1s_ref[...],
                    preferred_element_type=jnp.float32)
    # Bias + ReLU in the elementwise dtype (halves the (TM, Hp) intermediate
    # traffic on bf16-VPU chips; stays f32 on v5e).
    h = jnp.maximum(h.astype(ew) + b1_ref[...], 0.0)

    # fc2 + bias + ReLU.
    h = jnp.dot(h.astype(mx), w2_ref[...], preferred_element_type=jnp.float32)
    h = jnp.maximum(h.astype(ew) + b2_ref[...], 0.0)

    # fc3 (output dim 1): contract the hidden dims of w3 (1, Hp) and h (TM, Hp)
    # so the per-tile result is a lane-dense (1, TM) row, not a masked column.
    v = jax.lax.dot_general(w3_ref[...], h.astype(mx),
                            dimension_numbers=(((1,), (1,)), ((), ())),
                            preferred_element_type=jnp.float32)
    v = v + b3_ref[0, 0]
    o_ref[...] = v.reshape(o_ref.shape).astype(o_ref.dtype)


def pack_params(params, belief_size, state_size, hidden_size,
                mxu_dtype=jnp.bfloat16, elementwise_dtype=jnp.float32):
    """Re-pack PyTorch-layout (out,in) Linear params for the kernel.

    Transpose to (in, out), split W1 at the belief/state boundary, zero-pad
    the hidden dim to a multiple of 128 (mathematically inert), store matmul
    operands (fc1/fc2/fc3 weights) in `mxu_dtype`, and biases b1/b2 in
    `elementwise_dtype` (bf16 on bf16-VPU chips, f32 otherwise).
    """
    hp = _round_up(max(hidden_size, 1), 128)
    ph = hp - hidden_size

    w1 = jnp.asarray(params["fc1_w"], jnp.float32).T            # (Db+Ds, H)
    w1b = jnp.pad(w1[:belief_size], ((0, 0), (0, ph)))
    w1s = jnp.pad(w1[belief_size:], ((0, 0), (0, ph)))
    b1 = jnp.pad(jnp.asarray(params["fc1_b"], jnp.float32), (0, ph))
    w2 = jnp.pad(jnp.asarray(params["fc2_w"], jnp.float32).T, ((0, ph), (0, ph)))
    b2 = jnp.pad(jnp.asarray(params["fc2_b"], jnp.float32), (0, ph))
    w3 = jnp.pad(jnp.asarray(params["fc3_w"], jnp.float32), ((0, 0), (0, ph)))
    b3 = jnp.asarray(params["fc3_b"], jnp.float32).reshape(1, 1)

    return {
        "w1b": w1b.astype(mxu_dtype),                    # (Db, Hp)
        "w1s": w1s.astype(mxu_dtype),                    # (Ds, Hp)
        "b1": b1.reshape(1, hp).astype(elementwise_dtype),
        "w2": w2.astype(mxu_dtype),                      # (Hp, Hp)
        "b2": b2.reshape(1, hp).astype(elementwise_dtype),
        "w3": w3.astype(mxu_dtype),                      # (1, Hp)
        "b3": b3,                                        # (1, 1) f32 -> SMEM
    }


def _pick_tile(batch, tm):
    """Pick the batch tile size (sublane dim of the input blocks).

    - batch <= 256: single full-batch block (block dims == array dims, so the
      (8,128) divisibility rule is satisfied even for odd batch sizes).
    - otherwise: at least 2 grid steps (keeps both v7x TensorCores busy) and a
      128-multiple tile that (nearly) evenly divides the batch, so the last
      (possibly partial) tile carries few dead rows and no wrapper-side pad is
      needed.
    """
    if batch <= 256:
        return batch
    n_tiles = max(2, _cdiv(batch, tm))
    tile = _round_up(_cdiv(batch, n_tiles), 128)
    return min(tile, _round_up(batch, 128))


def value_model_forward(belief, state, packed, *, tm=1024):
    """Pallas ValueModel forward. belief: [B, Db], state: [B, Ds] -> value: [B]."""
    B, db = belief.shape
    ds = state.shape[1]

    tm_eff = _pick_tile(B, tm)
    grid_b = _cdiv(B, tm_eff)

    def resident(shape):                        # weights/biases stay in VMEM
        return pl.BlockSpec(shape, lambda i: (0, 0))
    # NOTE: constant-index blocks are still double-buffered by default; at the
    # hidden sizes used here that costs < 100 KiB, so pipeline_mode tweaks are
    # not worth the risk.  Revisit (pl.Buffered) only for Hp >= 1024 on v7x.

    out = pl.pallas_call(
        _value_kernel,
        out_shape=jax.ShapeDtypeStruct((grid_b, 1, tm_eff), jnp.float32),
        grid=(grid_b,),
        in_specs=[
            pl.BlockSpec((tm_eff, db), lambda i: (i, 0)),        # belief tile
            pl.BlockSpec((tm_eff, ds), lambda i: (i, 0)),        # state tile
            resident(packed["w1b"].shape),
            resident(packed["w1s"].shape),
            resident(packed["b1"].shape),
            resident(packed["w2"].shape),
            resident(packed["b2"].shape),
            resident(packed["w3"].shape),
            pl.BlockSpec(memory_space=pltpu.MemorySpace.SMEM),   # b3 scalar
        ],
        out_specs=pl.BlockSpec((1, 1, tm_eff), lambda i: (i, 0, 0)),
        compiler_params=pltpu.CompilerParams(
            dimension_semantics=("parallel",),
            vmem_limit_bytes=32 * 1024 * 1024,
        ),
    )(belief, state, packed["w1b"], packed["w1s"], packed["b1"],
      packed["w2"], packed["b2"], packed["w3"], packed["b3"])

    # Flatten (G, 1, TM) -> (B,)  (the .squeeze(dim=1) of the original module).
    # Rows beyond B (dead rows of a partial last tile) are dropped here.
    return out.reshape(-1)[:B]


def init_params(key, belief_size, state_size, hidden_size):
    """Deterministic synthetic init matching nn.Linear layout: W (out, in), b (out,)."""
    in_dim = belief_size + state_size
    k1, k2, k3 = jax.random.split(key, 3)

    def linear(k, fan_in, fan_out):
        bound = 1.0 / (fan_in ** 0.5)
        kw, kb = jax.random.split(k)
        w = jax.random.uniform(kw, (fan_out, fan_in), jnp.float32, -bound, bound)
        b = jax.random.uniform(kb, (fan_out,), jnp.float32, -bound, bound)
        return w, b

    w1, b1 = linear(k1, in_dim, hidden_size)
    w2, b2 = linear(k2, hidden_size, hidden_size)
    w3, b3 = linear(k3, hidden_size, 1)
    return {"fc1_w": w1, "fc1_b": b1, "fc2_w": w2, "fc2_b": b2,
            "fc3_w": w3, "fc3_b": b3}


def reference_forward(belief, state, params, mxu_dtype=None, ew_dtype=None):
    """Pure-JAX reference.  mxu_dtype emulates reduced-precision MXU operands;
    ew_dtype emulates the reduced-precision elementwise (bias+ReLU) path."""
    def mx(a):
        return a.astype(mxu_dtype) if mxu_dtype is not None else a

    def ew(a):
        return a.astype(ew_dtype) if ew_dtype is not None else a

    x = jnp.concatenate([belief, state], axis=1)
    h = jnp.dot(mx(x), mx(params["fc1_w"].T), preferred_element_type=jnp.float32)
    h = jnp.maximum(ew(h) + ew(params["fc1_b"]), 0.0)
    h = jnp.dot(mx(h), mx(params["fc2_w"].T), preferred_element_type=jnp.float32)
    h = jnp.maximum(ew(h) + ew(params["fc2_b"]), 0.0)
    v = jnp.dot(mx(h), mx(params["fc3_w"].T), preferred_element_type=jnp.float32)
    return (v + params["fc3_b"])[:, 0]


if __name__ == "__main__":
    belief_size, state_size, hidden_size = 16, 16, 32

    key = jax.random.PRNGKey(0)
    kp, kb, ks, kb2, ks2 = jax.random.split(key, 5)

    params = init_params(kp, belief_size, state_size, hidden_size)

    use_bf16_ew = _has_bf16_vpu()               # bf16 elementwise on v6e/v7x
    ew_dtype = jnp.bfloat16 if use_bf16_ew else jnp.float32
    packed = pack_params(params, belief_size, state_size, hidden_size,
                         mxu_dtype=jnp.bfloat16, elementwise_dtype=ew_dtype)

    # Emulation reference mirrors the kernel's precision choices; a bf16 ulp
    # flip at a rounding boundary can shift downstream values by ~1e-3, hence
    # the looser tolerance when the bf16 elementwise path is active.
    emul_tol = 2e-2 if use_bf16_ew else 1e-4
    ref_ew = jnp.bfloat16 if use_bf16_ew else None

    # Small case (single grid step, block == full batch).
    batch = 2
    belief = jax.random.normal(kb, (batch, belief_size), jnp.float32)
    state = jax.random.normal(ks, (batch, state_size), jnp.float32)
    value = value_model_forward(belief, state, packed)
    jax.block_until_ready(value)
    assert value.shape == (batch,)
    ref_emul = reference_forward(belief, state, params,
                                 mxu_dtype=jnp.bfloat16, ew_dtype=ref_ew)
    assert jnp.allclose(value, ref_emul, atol=emul_tol, rtol=emul_tol)
    # Looser check vs. the original f32 module semantics (bf16 MXU/elementwise
    # deviates from the f32 nn.Linear math; accepted at 5e-2).
    ref_f32 = reference_forward(belief, state, params)
    assert jnp.allclose(value, ref_f32, atol=5e-2, rtol=5e-2)

    # Larger case exercising the multi-step grid + partial last tile
    # (600 rows -> 2 tiles of 384, second tile partial, no wrapper pad).
    batch2 = 600
    belief2 = jax.random.normal(kb2, (batch2, belief_size), jnp.float32)
    state2 = jax.random.normal(ks2, (batch2, state_size), jnp.float32)
    value2 = value_model_forward(belief2, state2, packed)
    jax.block_until_ready(value2)
    assert value2.shape == (batch2,)
    ref2_emul = reference_forward(belief2, state2, params,
                                  mxu_dtype=jnp.bfloat16, ew_dtype=ref_ew)
    assert jnp.allclose(value2, ref2_emul, atol=emul_tol, rtol=emul_tol)
    ref2_f32 = reference_forward(belief2, state2, params)
    assert jnp.allclose(value2, ref2_f32, atol=5e-2, rtol=5e-2)

    print("KERNEL_OK")
</pallas_src>

<mosaic_0001>
module attributes {stable_mosaic.version = 11 : i64} {
  func.func @_value_kernel(%arg0: i32, %arg1: memref<2x16xf32, #tpu.memory_space<vmem>>, %arg2: memref<2x16xf32, #tpu.memory_space<vmem>>, %arg3: memref<16x128xbf16, #tpu.memory_space<vmem>>, %arg4: memref<16x128xbf16, #tpu.memory_space<vmem>>, %arg5: memref<1x128xf32, #tpu.memory_space<vmem>>, %arg6: memref<128x128xbf16, #tpu.memory_space<vmem>>, %arg7: memref<1x128xf32, #tpu.memory_space<vmem>>, %arg8: memref<1x128xbf16, #tpu.memory_space<vmem>>, %arg9: memref<1x1xf32, #tpu.memory_space<smem>>, %arg10: memref<1x1x2xf32, #tpu.memory_space<vmem>>) attributes {dimension_semantics = [#tpu.dimension_semantics<parallel>], iteration_bounds = array<i64: 1>, scalar_prefetch = 0 : i64, scratch_operands = 0 : i64, tpu.core_type = #tpu.core_type<tc>, window_params = [{transform_indices = @transform_0, window_bounds = array<i64: 2, 16>}, {transform_indices = @transform_1, window_bounds = array<i64: 2, 16>}, {pipeline_mode = #tpu.pipeline_mode<synchronous>, transform_indices = @transform_2, window_bounds = array<i64: 16, 128>}, {pipeline_mode = #tpu.pipeline_mode<synchronous>, transform_indices = @transform_3, window_bounds = array<i64: 16, 128>}, {pipeline_mode = #tpu.pipeline_mode<synchronous>, transform_indices = @transform_4, window_bounds = array<i64: 1, 128>}, {pipeline_mode = #tpu.pipeline_mode<synchronous>, transform_indices = @transform_5, window_bounds = array<i64: 128, 128>}, {pipeline_mode = #tpu.pipeline_mode<synchronous>, transform_indices = @transform_6, window_bounds = array<i64: 1, 128>}, {pipeline_mode = #tpu.pipeline_mode<synchronous>, transform_indices = @transform_7, window_bounds = array<i64: 1, 128>}, {transform_indices = @transform_8, window_bounds = array<i64: 1, 1>}, {transform_indices = @transform_9, window_bounds = array<i64: 1, 1, 2>}]} {
    %c0 = arith.constant 0 : index
    %c0_0 = arith.constant 0 : index
    %0 = vector.load %arg1[%c0, %c0_0] : memref<2x16xf32, #tpu.memory_space<vmem>>, vector<2x16xf32>
    %1 = arith.truncf %0 : vector<2x16xf32> to vector<2x16xbf16>
    %c0_1 = arith.constant 0 : index
    %c0_2 = arith.constant 0 : index
    %2 = vector.load %arg3[%c0_1, %c0_2] : memref<16x128xbf16, #tpu.memory_space<vmem>>, vector<16x128xbf16>
    %cst = arith.constant dense<0.000000e+00> : vector<2x128xf32>
    %3 = tpu.matmul %1, %2, %cst {dimension_numbers = #tpu.dot_dimension_numbers<[1], [0], [0], [1], [0, 0, 1, 1], [], []>} : vector<2x16xbf16>, vector<16x128xbf16>, vector<2x128xf32> -> vector<2x128xf32>
    %c0_3 = arith.constant 0 : index
    %c0_4 = arith.constant 0 : index
    %4 = vector.load %arg2[%c0_3, %c0_4] : memref<2x16xf32, #tpu.memory_space<vmem>>, vector<2x16xf32>
    %5 = arith.truncf %4 : vector<2x16xf32> to vector<2x16xbf16>
    %c0_5 = arith.constant 0 : index
    %c0_6 = arith.constant 0 : index
    %6 = vector.load %arg4[%c0_5, %c0_6] : memref<16x128xbf16, #tpu.memory_space<vmem>>, vector<16x128xbf16>
    %cst_7 = arith.constant dense<0.000000e+00> : vector<2x128xf32>
    %7 = tpu.matmul %5, %6, %cst_7 {dimension_numbers = #tpu.dot_dimension_numbers<[1], [0], [0], [1], [0, 0, 1, 1], [], []>} : vector<2x16xbf16>, vector<16x128xbf16>, vector<2x128xf32> -> vector<2x128xf32>
    %8 = arith.addf %3, %7 : vector<2x128xf32>
    %c0_8 = arith.constant 0 : index
    %c0_9 = arith.constant 0 : index
    %9 = vector.load %arg5[%c0_8, %c0_9] : memref<1x128xf32, #tpu.memory_space<vmem>>, vector<1x128xf32>
    %10 = vector.broadcast %9 : vector<1x128xf32> to vector<2x128xf32>
    %11 = arith.addf %8, %10 : vector<2x128xf32>
    %cst_10 = arith.constant 0.000000e+00 : f32
    %12 = vector.broadcast %cst_10 : f32 to vector<2x128xf32>
    %13 = arith.maximumf %11, %12 : vector<2x128xf32>
    %14 = arith.truncf %13 : vector<2x128xf32> to vector<2x128xbf16>
    %c0_11 = arith.constant 0 : index
    %c0_12 = arith.constant 0 : index
    %15 = vector.load %arg6[%c0_11, %c0_12] : memref<128x128xbf16, #tpu.memory_space<vmem>>, vector<128x128xbf16>
    %cst_13 = arith.constant dense<0.000000e+00> : vector<2x128xf32>
    %16 = tpu.matmul %14, %15, %cst_13 {dimension_numbers = #tpu.dot_dimension_numbers<[1], [0], [0], [1], [0, 0, 1, 1], [], []>} : vector<2x128xbf16>, vector<128x128xbf16>, vector<2x128xf32> -> vector<2x128xf32>
    %c0_14 = arith.constant 0 : index
    %c0_15 = arith.constant 0 : index
    %17 = vector.load %arg7[%c0_14, %c0_15] : memref<1x128xf32, #tpu.memory_space<vmem>>, vector<1x128xf32>
    %18 = vector.broadcast %17 : vector<1x128xf32> to vector<2x128xf32>
    %19 = arith.addf %16, %18 : vector<2x128xf32>
    %cst_16 = arith.constant 0.000000e+00 : f32
    %20 = vector.broadcast %cst_16 : f32 to vector<2x128xf32>
    %21 = arith.maximumf %19, %20 : vector<2x128xf32>
    %c0_17 = arith.constant 0 : index
    %c0_18 = arith.constant 0 : index
    %22 = vector.load %arg8[%c0_17, %c0_18] : memref<1x128xbf16, #tpu.memory_space<vmem>>, vector<1x128xbf16>
    %23 = arith.truncf %21 : vector<2x128xf32> to vector<2x128xbf16>
    %cst_19 = arith.constant dense<0.000000e+00> : vector<1x2xf32>
    %24 = tpu.matmul %22, %23, %cst_19 {dimension_numbers = #tpu.dot_dimension_numbers<[1], [1], [0], [0], [0, 0, 1, 0], [], []>} : vector<1x128xbf16>, vector<2x128xbf16>, vector<1x2xf32> -> vector<1x2xf32>
    %c0_20 = arith.constant 0 : index
    %c0_21 = arith.constant 0 : index
    %25 = memref.load %arg9[%c0_20, %c0_21] : memref<1x1xf32, #tpu.memory_space<smem>>
    %26 = vector.broadcast %25 : f32 to vector<1x2xf32>
    %27 = arith.addf %24, %26 : vector<1x2xf32>
    %28 = vector.shape_cast %27 : vector<1x2xf32> to vector<1x1x2xf32>
    %c0_22 = arith.constant 0 : index
    %c0_23 = arith.constant 0 : index
    %c0_24 = arith.constant 0 : index
    %29 = vector.load %arg10[%c0_22, %c0_23, %c0_24] : memref<1x1x2xf32, #tpu.memory_space<vmem>>, vector<1x1x2xf32>
    tpu.vector_store %arg10[%c0_22, %c0_23, %c0_24], %28 {strides = array<i32>} : memref<1x1x2xf32, #tpu.memory_space<vmem>>, vector<1x1x2xf32>,
    return
  }
  func.func @transform_0(%arg0: i32) -> (i32, i32) {
    %c0_i32 = arith.constant 0 : i32
    %c0_i32_0 = arith.constant 0 : i32
    return %arg0, %c0_i32 : i32, i32
  }
  func.func @transform_1(%arg0: i32) -> (i32, i32) {
    %c0_i32 = arith.constant 0 : i32
    %c0_i32_0 = arith.constant 0 : i32
    return %arg0, %c0_i32 : i32, i32
  }
  func.func @transform_2(%arg0: i32) -> (i32, i32) {
    %c0_i32 = arith.constant 0 : i32
    %c0_i32_0 = arith.constant 0 : i32
    %c0_i32_1 = arith.constant 0 : i32
    return %c0_i32, %c0_i32_0 : i32, i32
  }
  func.func @transform_3(%arg0: i32) -> (i32, i32) {
    %c0_i32 = arith.constant 0 : i32
    %c0_i32_0 = arith.constant 0 : i32
    %c0_i32_1 = arith.constant 0 : i32
    return %c0_i32, %c0_i32_0 : i32, i32
  }
  func.func @transform_4(%arg0: i32) -> (i32, i32) {
    %c0_i32 = arith.constant 0 : i32
    %c0_i32_0 = arith.constant 0 : i32
    %c0_i32_1 = arith.constant 0 : i32
    return %c0_i32, %c0_i32_0 : i32, i32
  }
  func.func @transform_5(%arg0: i32) -> (i32, i32) {
    %c0_i32 = arith.constant 0 : i32
    %c0_i32_0 = arith.constant 0 : i32
    %c0_i32_1 = arith.constant 0 : i32
    return %c0_i32, %c0_i32_0 : i32, i32
  }
  func.func @transform_6(%arg0: i32) -> (i32, i32) {
    %c0_i32 = arith.constant 0 : i32
    %c0_i32_0 = arith.constant 0 : i32
    %c0_i32_1 = arith.constant 0 : i32
    return %c0_i32, %c0_i32_0 : i32, i32
  }
  func.func @transform_7(%arg0: i32) -> (i32, i32) {
    %c0_i32 = arith.constant 0 : i32
    %c0_i32_0 = arith.constant 0 : i32
    %c0_i32_1 = arith.constant 0 : i32
    return %c0_i32, %c0_i32_0 : i32, i32
  }
  func.func @transform_8(%arg0: i32) -> (i32, i32) {
    %c0_i32 = arith.constant 0 : i32
    %c0_i32_0 = arith.constant 0 : i32
    %c0_i32_1 = arith.constant 0 : i32
    return %c0_i32, %c0_i32_0 : i32, i32
  }
  func.func @transform_9(%arg0: i32) -> (i32, i32, i32) {
    %c0_i32 = arith.constant 0 : i32
    %c0_i32_0 = arith.constant 0 : i32
    %c0_i32_1 = arith.constant 0 : i32
    return %arg0, %c0_i32, %c0_i32_0 : i32, i32, i32
  }
}

</mosaic_0001>

<llo_original>
// kernel: tpu_custom_call.1
$region0: #{tpu_custom_call.1}
  #allocation0 [shape = 'u32[]', space=smem, size = 0x4, offset = 0x4, fixed_abs, tag = 'smem constant byte address 0x4 - core index']
  #allocation1 [shape = 'u32[72,128]{1,0:T(1,128)}', space=vmem, size = 0x9000, scoped, tag = 'internal scratch']
  #allocation2 [shape = 'f32[1,1]{1,0:T(1,128)S(6)}', space=smem, size = 0x200, scoped, tag = 'scoped memory for tpu_custom_call.1']
  %s0 = inlined_call_operand.vmem [shape: f32[2,16], index: 0, kind: input, shape index: {}]
  %s1 = inlined_call_operand.hbm [shape: f32[2,16], index: 1, kind: input, shape index: {}]
  %s2 = inlined_call_operand.hbm [shape: bf16[16,128], index: 2, kind: input, shape index: {}]
  %s3 = inlined_call_operand.hbm [shape: bf16[16,128], index: 3, kind: input, shape index: {}]
  %s4 = inlined_call_operand.vmem [shape: f32[1,128], index: 4, kind: input, shape index: {}]
  %s5 = inlined_call_operand.hbm [shape: bf16[128,128], index: 5, kind: input, shape index: {}]
  %s6 = inlined_call_operand.vmem [shape: f32[1,128], index: 6, kind: input, shape index: {}]
  %s7 = inlined_call_operand.vmem [shape: bf16[1,128], index: 7, kind: input, shape index: {}]
  %s8 = inlined_call_operand.<no memory space> [shape: f32[1,1], index: 8, kind: input, shape index: {}]
  %s9 = inlined_call_operand.hbm [shape: f32[1,1,2], index: 9, kind: output, shape index: {}]
  %s10 = sld [smem:[#allocation0]]
  $region62: #{tpu_custom_call.1} parent=0
    _
  %s12 = ssub.s32 1, %s10
  %s13 = scalar_select 0, %s12, %s10
  %14 = sst [smem:[#allocation2]] %s8
  $region1: #{tpu_custom_call.1} parent=0
    #allocation3 [shape = 'u8[1024]{0}', space=vmem, size = 0x400, scoped, tag = 'input window, operand 1, single buffered']
    #allocation4 [shape = 's32[1]{0}', space=sflag, size = 0x4, scoped, tag = 'scoped memory for tpu_custom_call.1']
    #allocation5 [shape = 's32[1]{0}', space=sflag, size = 0x4, scoped, tag = 'scoped memory for tpu_custom_call.1']
    #allocation6 [shape = 'u8[4096]{0}', space=vmem, size = 0x1000, scoped, tag = 'input window, operand 2, single buffered']
    #allocation7 [shape = 's32[1]{0}', space=sflag, size = 0x4, scoped, tag = 'scoped memory for tpu_custom_call.1']
    #allocation8 [shape = 'u8[4096]{0}', space=vmem, size = 0x1000, scoped, tag = 'input window, operand 3, single buffered']
    #allocation9 [shape = 'u8[32768]{0}', space=vmem, size = 0x8000, scoped, tag = 'input window, operand 5, single buffered']
    #allocation10 [shape = 's32[1]{0}', space=sflag, size = 0x4, scoped, tag = 'scoped memory for tpu_custom_call.1']
    #allocation11 [shape = 'u8[512]{0}', space=vmem, size = 0x400, scoped, tag = 'output window, operand 0, single buffered']
    %15 = vsyncpa [#allocation4], 0
    %16 = vsyncpa [#allocation7], 0
    %17 = vsyncpa [#allocation10], 0
    %18 = vsyncpa [#allocation5], 0
    // Predicated region
    $region2: #{tpu_custom_call.1} parent=1 // pred_check
      _
    $region3: #{tpu_custom_call.1} parent=1 // pred_check_branch
      %20 = sbr.rel (0) target = $region5
    $region4: #{tpu_custom_call.1} parent=1 // pred_region
      _
    $region5: #{tpu_custom_call.1} parent=1 // pred_fallthru
      _
    // Predicated region
    $region6: #{tpu_custom_call.1} parent=1 // pred_check
      _
    $region7: #{tpu_custom_call.1} parent=1 // pred_check_branch
      %22 = sbr.rel (0) target = $region9
    $region8: #{tpu_custom_call.1} parent=1 // pred_region
      %24 = vsyncadd [#allocation4], 0
      %s26 = sshll.u32 %s1, 4
      %s27 = int_to_ptr.hbm [resolvable:$true] %s26
      %s28 = sshll.u32 [#allocation3], 4
      %s29 = int_to_ptr.vmem [resolvable:$true] %s28
      %31 = dma.hbm_to_vmem [thread:$0]  %s27, 32, %s29, [#allocation4]
    $region9: #{tpu_custom_call.1} parent=1 // pred_fallthru
      _
    // Predicated region
    $region10: #{tpu_custom_call.1} parent=1 // pred_check
      _
    $region11: #{tpu_custom_call.1} parent=1 // pred_check_branch
      %33 = sbr.rel (0) target = $region13
    $region12: #{tpu_custom_call.1} parent=1 // pred_region
      %35 = vsyncadd [#allocation7], 0
      %s36 = sshll.u32 %s2, 4
      %s37 = int_to_ptr.hbm [resolvable:$true] %s36
      %s38 = sshll.u32 [#allocation6], 4
      %s39 = int_to_ptr.vmem [resolvable:$true] %s38
      %44 = dma.hbm_to_vmem [thread:$0]  %s37, 128, %s39, [#allocation7], 64, 64, 4
    $region13: #{tpu_custom_call.1} parent=1 // pred_fallthru
      _
    // Predicated region
    $region14: #{tpu_custom_call.1} parent=1 // pred_check
      _
    $region15: #{tpu_custom_call.1} parent=1 // pred_check_branch
      %46 = sbr.rel (0) target = $region17
    $region16: #{tpu_custom_call.1} parent=1 // pred_region
      %48 = vsyncadd [#allocation7], 0
      %s49 = sshll.u32 %s3, 4
      %s50 = int_to_ptr.hbm [resolvable:$true] %s49
      %s51 = sshll.u32 [#allocation8], 4
      %s52 = int_to_ptr.vmem [resolvable:$true] %s51
      %57 = dma.hbm_to_vmem [thread:$0]  %s50, 128, %s52, [#allocation7], 64, 64, 4
    $region17: #{tpu_custom_call.1} parent=1 // pred_fallthru
      _
    // Predicated region
    $region18: #{tpu_custom_call.1} parent=1 // pred_check
      _
    $region19: #{tpu_custom_call.1} parent=1 // pred_check_branch
      %59 = sbr.rel (0) target = $region21
    $region20: #{tpu_custom_call.1} parent=1 // pred_region
      _
    $region21: #{tpu_custom_call.1} parent=1 // pred_fallthru
      _
    // Predicated region
    $region22: #{tpu_custom_call.1} parent=1 // pred_check
      _
    $region23: #{tpu_custom_call.1} parent=1 // pred_check_branch
      %61 = sbr.rel (0) target = $region25
    $region24: #{tpu_custom_call.1} parent=1 // pred_region
      %63 = vsyncadd [#allocation10], 0
      %s64 = sshll.u32 %s5, 4
      %s65 = int_to_ptr.hbm [resolvable:$true] %s64
      %s66 = sshll.u32 [#allocation9], 4
      %s67 = int_to_ptr.vmem [resolvable:$true] %s66
      %72 = dma.hbm_to_vmem [thread:$0]  %s65, 1024, %s67, [#allocation10], 64, 64, 4
    $region25: #{tpu_custom_call.1} parent=1 // pred_fallthru
      _
    // Predicated region
    $region26: #{tpu_custom_call.1} parent=1 // pred_check
      _
    $region27: #{tpu_custom_call.1} parent=1 // pred_check_branch
      %74 = sbr.rel (0) target = $region29
    $region28: #{tpu_custom_call.1} parent=1 // pred_region
      _
    $region29: #{tpu_custom_call.1} parent=1 // pred_fallthru
      _
    // Predicated region
    $region30: #{tpu_custom_call.1} parent=1 // pred_check
      _
    $region31: #{tpu_custom_call.1} parent=1 // pred_check_branch
      %76 = sbr.rel (0) target = $region33
    $region32: #{tpu_custom_call.1} parent=1 // pred_region
      _
    $region33: #{tpu_custom_call.1} parent=1 // pred_fallthru
      _
    // Predicated region
    $region34: #{tpu_custom_call.1} parent=1 // pred_check
      _
    $region35: #{tpu_custom_call.1} parent=1 // pred_check_branch
      %78 = sbr.rel (0) target = $region37
    $region36: #{tpu_custom_call.1} parent=1 // pred_region
      _
    $region37: #{tpu_custom_call.1} parent=1 // pred_fallthru
      _
    // Predicated region
    $region38: #{tpu_custom_call.1} parent=1 // pred_check
      _
    $region39: #{tpu_custom_call.1} parent=1 // pred_check_branch
      %80 = sbr.rel (0) target = $region41
    $region40: #{tpu_custom_call.1} parent=1 // pred_region
      %82 = dma.done [#allocation4], 32
    $region41: #{tpu_custom_call.1} parent=1 // pred_fallthru
      _
    // Predicated region
    $region42: #{tpu_custom_call.1} parent=1 // pred_check
      _
    $region43: #{tpu_custom_call.1} parent=1 // pred_check_branch
      %84 = sbr.rel (0) target = $region45
    $region44: #{tpu_custom_call.1} parent=1 // pred_region
      %86 = dma.done [#allocation7], 128
    $region45: #{tpu_custom_call.1} parent=1 // pred_fallthru
      _
    // Predicated region
    $region46: #{tpu_custom_call.1} parent=1 // pred_check
      _
    $region47: #{tpu_custom_call.1} parent=1 // pred_check_branch
      %88 = sbr.rel (0) target = $region49
    $region48: #{tpu_custom_call.1} parent=1 // pred_region
      %90 = dma.done [#allocation7], 128
    $region49: #{tpu_custom_call.1} parent=1 // pred_fallthru
      _
    // Predicated region
    $region50: #{tpu_custom_call.1} parent=1 // pred_check
      _
    $region51: #{tpu_custom_call.1} parent=1 // pred_check_branch
      %92 = sbr.rel (0) target = $region53
    $region52: #{tpu_custom_call.1} parent=1 // pred_region
      %94 = dma.done [#allocation10], 1024
    $region53: #{tpu_custom_call.1} parent=1 // pred_fallthru
      _
    %v96 = vld [vmem:[%s0] sm:$0x3]
    %v97 = vpack.c.bf16 %v96, %v96
    %v98 = vld [vmem:[#allocation6] sm:$0xf]
    %v99 = vld [vmem:[#allocation6 + $0x4] sm:$0xf]
    %v100 = vld [vmem:[#allocation3] sm:$0x3]
    %v101 = vpack.c.bf16 %v100, %v100
    %v102 = vld [vmem:[#allocation8] sm:$0xf]
    %v103 = vld [vmem:[#allocation8 + $0x4] sm:$0xf]
    %v106 = vunpack.c.l.b16 %v102
    %v107 = vunpack.c.l.b16 %v103
    %v108 = vpack.c.b16 %v107, %v106
    %vm110 = vcmask 130048
    %v112 = vsel %vm110, %v101, 0
    %114 = vmatpush.bf16.msra.mxu0 0
    %115 = vmatpush.bf16.msra.mxu0 0
    %116 = vmatpush.bf16.msra.mxu0 0
    %117 = vmatpush.bf16.msra.mxu0 0
    %118 = vmatpush.bf16.msra.mxu0 0
    %119 = vmatpush.bf16.msra.mxu0 0
    %120 = vmatpush.bf16.msra.mxu0 0
    %121 = vmatpush.bf16.msra.mxu0 %v108
    %122 = vmatmul.bf16.gmra.mxu0 %v112
    %v123 = vpop.f32.mrf.mxu0
    %v124 = vadd.f32 0.0, %v123
    %v125 = vpop.f32.mrf.mxu0
    %126 = vdwg.mxu0
    %v129 = vunpack.c.l.b16 %v98
    %v130 = vunpack.c.l.b16 %v99
    %v131 = vpack.c.b16 %v130, %v129
    %v134 = vsel %vm110, %v97, 0
    %136 = vmatpush.bf16.msra.mxu0 0
    %137 = vmatpush.bf16.msra.mxu0 0
    %138 = vmatpush.bf16.msra.mxu0 0
    %139 = vmatpush.bf16.msra.mxu0 0
    %140 = vmatpush.bf16.msra.mxu0 0
    %141 = vmatpush.bf16.msra.mxu0 0
    %142 = vmatpush.bf16.msra.mxu0 0
    %143 = vmatpush.bf16.msra.mxu0 %v131
    %144 = vmatmul.bf16.gmra.mxu0 %v134
    %v145 = vpop.f32.mrf.mxu0
    %v146 = vadd.f32 %v124, %v145
    %v147 = vpop.f32.mrf.mxu0
    %148 = vdwg.mxu0
    %v149 = vld [vmem:[%s4] sm:$0x1]
    %v151 = vperm.slane %v149, 0
    %v153 = vadd.f32 %v146, %v151
    %v154 = vmax.f32 %v153, 0.0
    %v155 = vpack.c.bf16 %v154, %v154
    %v156 = vld [vmem:[#allocation9] sm:$0xf]
    %v157 = vld [vmem:[#allocation9 + $0x4] sm:$0xf]
    %v158 = vld [vmem:[#allocation9 + $0x8] sm:$0xf]
    %v159 = vld [vmem:[#allocation9 + $0xc] sm:$0xf]
    %v160 = vld [vmem:[#allocation9 + $0x10] sm:$0xf]
    %v161 = vld [vmem:[#allocation9 + $0x14] sm:$0xf]
    %v162 = vld [vmem:[#allocation9 + $0x18] sm:$0xf]
    %v163 = vld [vmem:[#allocation9 + $0x1c] sm:$0xf]
    %v164 = vld [vmem:[#allocation9 + $0x20] sm:$0xf]
    %v165 = vld [vmem:[#allocation9 + $0x24] sm:$0xf]
    %v166 = vld [vmem:[#allocation9 + $0x28] sm:$0xf]
    %v167 = vld [vmem:[#allocation9 + $0x2c] sm:$0xf]
    %v168 = vld [vmem:[#allocation9 + $0x30] sm:$0xf]
    %v169 = vld [vmem:[#allocation9 + $0x34] sm:$0xf]
    %v170 = vld [vmem:[#allocation9 + $0x38] sm:$0xf]
    %v171 = vld [vmem:[#allocation9 + $0x3c] sm:$0xf]
    %v172 = vld [vmem:[%s6] sm:$0x1]
    %v174 = vperm.slane %v172, 0
    %v192 = vunpack.c.l.b16 %v156
    %v193 = vunpack.c.l.b16 %v157
    %v194 = vunpack.c.l.b16 %v158
    %v195 = vunpack.c.l.b16 %v159
    %v196 = vunpack.c.l.b16 %v160
    %v197 = vunpack.c.l.b16 %v161
    %v198 = vunpack.c.l.b16 %v162
    %v199 = vunpack.c.l.b16 %v163
    %v200 = vunpack.c.l.b16 %v164
    %v201 = vunpack.c.l.b16 %v165
    %v202 = vunpack.c.l.b16 %v166
    %v203 = vunpack.c.l.b16 %v167
    %v204 = vunpack.c.l.b16 %v168
    %v205 = vunpack.c.l.b16 %v169
    %v206 = vunpack.c.l.b16 %v170
    %v207 = vunpack.c.l.b16 %v171
    %v208 = vpack.c.b16 %v193, %v192
    %v209 = vpack.c.b16 %v195, %v194
    %v210 = vpack.c.b16 %v197, %v196
    %v211 = vpack.c.b16 %v199, %v198
    %v212 = vpack.c.b16 %v201, %v200
    %v213 = vpack.c.b16 %v203, %v202
    %v214 = vpack.c.b16 %v205, %v204
    %v215 = vpack.c.b16 %v207, %v206
    %224 = vmatpush.bf16.msra.mxu0 %v215
    %225 = vmatpush.bf16.msra.mxu0 %v214
    %226 = vmatpush.bf16.msra.mxu0 %v213
    %227 = vmatpush.bf16.msra.mxu0 %v212
    %228 = vmatpush.bf16.msra.mxu0 %v211
    %229 = vmatpush.bf16.msra.mxu0 %v210
    %230 = vmatpush.bf16.msra.mxu0 %v209
    %231 = vmatpush.bf16.msra.mxu0 %v208
    %232 = vmatmul.bf16.gmra.mxu0 %v155
    %v233 = vpop.f32.mrf.mxu0
    %v234 = vadd.f32 %v174, %v233
    %v235 = vpop.f32.mrf.mxu0
    %236 = vdwg.mxu0
    %v237 = vmax.f32 %v234, 0.0
    %v238 = vld [vmem:[%s7] sm:$0x1]
    %v239 = vpack.c.bf16 %v237, %v237
    %s240 = sld [smem:[#allocation2]]
    %v241 = vstv %s240
    %242 = vmatpush.bf16.xpose.msra.mxu0 0
    %243 = vmatpush.bf16.xpose.msra.mxu0 0
    %244 = vmatpush.bf16.xpose.msra.mxu0 0
    %245 = vmatpush.bf16.xpose.msra.mxu0 0
    %246 = vmatpush.bf16.xpose.msra.mxu0 0
    %247 = vmatpush.bf16.xpose.msra.mxu0 0
    %248 = vmatpush.bf16.xpose.msra.mxu0 0
    %249 = vmatpush.bf16.xpose.msra.mxu0 %v239
    %250 = vmatmul.bf16.gmra.mxu0 %v238
    %v251 = vpop.f32.mrf.mxu0
    %v252 = vadd.f32 %v241, %v251
    %v253 = vpop.f32.mrf.mxu0
    %254 = vdwg.mxu0
    %vm255 = vcmask 8192
    %256 = vst.msk [vmem:[#allocation11] sm:$0x1] %vm255, %v252
    // Predicated region
    $region54: #{tpu_custom_call.1} parent=1 // pred_check
      _
    $region55: #{tpu_custom_call.1} parent=1 // pred_check_branch
      %258 = sbr.rel (0) target = $region57
    $region56: #{tpu_custom_call.1} parent=1 // pred_region
      %260 = vsyncadd [#allocation5], 0
      %s262 = sshll.u32 [#allocation11], 4
      %s263 = int_to_ptr.vmem [resolvable:$true] %s262
      %s264 = sshll.u32 %s9, 4
      %s265 = int_to_ptr.hbm [resolvable:$true] %s264
      %267 = dma.vmem_to_hbm [thread:$0]  %s263, 16, %s265, [#allocation5]
    $region57: #{tpu_custom_call.1} parent=1 // pred_fallthru
      _
    // Predicated region
    $region58: #{tpu_custom_call.1} parent=1 // pred_check
      _
    $region59: #{tpu_custom_call.1} parent=1 // pred_check_branch
      %269 = sbr.rel (0) target = $region61
    $region60: #{tpu_custom_call.1} parent=1 // pred_region
      %271 = dma.done [#allocation5], 16
    $region61: #{tpu_custom_call.1} parent=1 // pred_fallthru
      _
    %272 = vsyncpa [#allocation4], 1
    %273 = vsyncpa [#allocation7], 1
    %274 = vsyncpa [#allocation10], 1
    %275 = vsyncpa [#allocation5], 1

</llo_original>
